<compile_context>
chip_gen: v7x
topology: tpu7x:2x2x1
jax: 0.10.0
libtpu: 0.0.40
codegen_flags: <defaults>
</compile_context>

<pallas_src>
import functools

import jax
import jax.numpy as jnp
from jax import lax
from jax.experimental import pallas as pl
from jax.experimental.pallas import tpu as pltpu

LANE = 128      # TPU vreg lane width
SUBLANE = 8     # f32 sublane count
_TILE_VMEM_BUDGET = 16 << 20   # budget for the double-buffered x/out tiles


def _fused_mlp_l2_kernel(*refs, n_layers):
    """refs = (x_ref, w0_ref, b0_ref, ..., w{n-1}_ref, b{n-1}_ref, o_ref).

    x -> [Linear + ReLU]*(n-1) -> Linear + Tanh -> L2-normalize(axis=1).
    Weights are bf16 (MXU operands); activations / biases / norm stay f32.
    """
    x_ref = refs[0]
    o_ref = refs[-1]
    wb_refs = refs[1:-1]

    x = x_ref[...].astype(jnp.float32)
    for i in range(n_layers):
        w = wb_refs[2 * i][...]                       # (in_f, out_f) bf16
        b = wb_refs[2 * i + 1][...]                   # (1, out_f)   f32
        # bf16 MXU operands, f32 accumulation.
        y = jnp.dot(x.astype(w.dtype), w, preferred_element_type=jnp.float32)
        x = y + b.astype(jnp.float32)
        if i == n_layers - 1:
            x = jnp.tanh(x)
        else:
            x = jnp.maximum(x, 0.0)

    # L2 normalize along features. No epsilon — matches the PyTorch reference,
    # which divides by sqrt(sum(|x|^2)) directly. rsqrt uses the EUP slot.
    ssq = jnp.sum(x * x, axis=1, keepdims=True)
    x = x * lax.rsqrt(ssq)

    o_ref[...] = x.astype(o_ref.dtype)


def _prepare_params(params):
    """Cast weights to bf16; zero-pad the last layer's output features to a lane
    multiple so the output store is lane-dense. Padded columns come out as
    tanh(0) = 0 and do not affect the L2 norm. Biases stay f32 (negligible bytes)."""
    n = len(params)
    out_f = params[-1][0].shape[1]
    out_pad = out_f if out_f % LANE == 0 else pl.cdiv(out_f, LANE) * LANE
    kparams = []
    for li, (w, b) in enumerate(params):
        w = w.astype(jnp.bfloat16)
        b = b.astype(jnp.float32).reshape(1, -1)
        if li == n - 1 and out_pad != out_f:
            w = jnp.pad(w, ((0, 0), (0, out_pad - out_f)))
            b = jnp.pad(b, ((0, 0), (0, out_pad - out_f)))
        kparams.append((w, b))
    return kparams, out_pad


def _pick_batch_tile(batch, bytes_per_row, vmem_budget_bytes):
    """Largest multiple-of-8 batch tile (cap 2048) whose double-buffered x/out
    tiles fit the VMEM budget; keep >=2 grid blocks when the batch allows so both
    v7x TensorCores get work."""
    tile = 2048
    while tile > SUBLANE and 2 * tile * bytes_per_row > vmem_budget_bytes:
        tile //= 2
    if batch >= 2 * SUBLANE:
        tile = min(tile, max(SUBLANE, (batch // 2) // SUBLANE * SUBLANE))
    else:
        tile = min(tile, SUBLANE * pl.cdiv(batch, SUBLANE))
    return tile


def my_module_forward(x, params):
    """Fused forward of MyModule. `params` = [(W (in,out) f32, b (1,out) f32), ...]."""
    batch, in_f = x.shape
    n_layers = len(params)
    out_f = params[-1][0].shape[1]

    kparams, out_pad = _prepare_params(params)

    # Batch tiling + ragged-batch padding (cdiv grid, padded rows sliced off).
    bytes_per_row = (in_f + out_pad) * x.dtype.itemsize
    tile_b = _pick_batch_tile(batch, bytes_per_row, _TILE_VMEM_BUDGET)
    num_tiles = pl.cdiv(batch, tile_b)
    padded_batch = num_tiles * tile_b
    x_in = x if padded_batch == batch else jnp.pad(x, ((0, padded_batch - batch), (0, 0)))

    flat_wb = []
    for (w, b) in kparams:
        flat_wb.extend([w, b])

    # Explicit VMEM budget: resident weights (x2 for worst-case double-buffer),
    # double-buffered x/out tiles, plus slack for Mosaic internals.
    wb_bytes = sum(a.size * a.dtype.itemsize for a in flat_wb)
    tile_bytes = 2 * tile_b * (in_f + out_pad) * x.dtype.itemsize
    vmem_limit = int(min(max(2 * wb_bytes + tile_bytes + (2 << 20), 16 << 20), 48 << 20))

    # Advisory cost estimate.
    flops = int(2 * padded_batch * sum(w.shape[0] * w.shape[1] for (w, _) in kparams))
    transcendentals = int(padded_batch * out_pad + padded_batch)
    bytes_accessed = int(x_in.size * x_in.dtype.itemsize + wb_bytes
                         + padded_batch * out_pad * x.dtype.itemsize)

    kernel = functools.partial(_fused_mlp_l2_kernel, n_layers=n_layers)

    def run(single_buffer_weights):
        wkw = {}
        if single_buffer_weights and hasattr(pl, "Buffered"):
            # Constant-index weight/bias blocks don't need double-buffering.
            wkw = dict(pipeline_mode=pl.Buffered(1))
        in_specs = [pl.BlockSpec((tile_b, in_f), lambda i: (i, 0))]
        for (w, b) in kparams:
            in_specs.append(pl.BlockSpec(w.shape, lambda i: (0, 0), **wkw))
            in_specs.append(pl.BlockSpec(b.shape, lambda i: (0, 0), **wkw))
        out_specs = pl.BlockSpec((tile_b, out_pad), lambda i: (i, 0))
        return pl.pallas_call(
            kernel,
            out_shape=jax.ShapeDtypeStruct((padded_batch, out_pad), x.dtype),
            grid=(num_tiles,),
            in_specs=in_specs,
            out_specs=out_specs,
            compiler_params=pltpu.CompilerParams(
                dimension_semantics=("parallel",),
                vmem_limit_bytes=vmem_limit,
            ),
            cost_estimate=pl.CostEstimate(
                flops=flops,
                transcendentals=transcendentals,
                bytes_accessed=bytes_accessed,
            ),
        )(x_in, *flat_wb)

    try:
        out = run(True)
    except Exception:
        # pl.Buffered(1) not supported by this JAX build — perf-only fallback.
        out = run(False)

    return out[:batch, :out_f]


def init_params(key, sizes):
    """PyTorch nn.Linear default init: U(-1/sqrt(in_f), 1/sqrt(in_f)).
    Stored as (in_f, out_f) == PyTorch weight.T; bias as (1, out_f)."""
    params = []
    for in_f, out_f in zip(sizes, sizes[1:]):
        key, kw, kb = jax.random.split(key, 3)
        bound = 1.0 / jnp.sqrt(jnp.float32(in_f))
        w = jax.random.uniform(kw, (in_f, out_f), jnp.float32, -bound, bound)
        b = jax.random.uniform(kb, (1, out_f), jnp.float32, -bound, bound)
        params.append((w, b))
    return params


def reference_forward(x, params, weights_dtype=jnp.float32):
    """Pure-JAX reference mirroring the PyTorch module. With
    weights_dtype=bfloat16 it replicates the kernel's mixed precision exactly."""
    n = len(params)
    h = x
    for i, (w, b) in enumerate(params):
        w = w.astype(weights_dtype)
        h = jnp.dot(h.astype(w.dtype), w, preferred_element_type=jnp.float32)
        h = h + b.reshape(1, -1).astype(jnp.float32)
        h = jnp.tanh(h) if i == n - 1 else jnp.maximum(h, 0.0)
    return h / jnp.sqrt(jnp.sum(jnp.abs(h) ** 2, axis=1, keepdims=True))


if __name__ == "__main__":
    # MLP: Linear(32->64)+ReLU, Linear(64->16)+Tanh, then per-row L2 norm.
    sizes = [32, 64, 16]
    batch = 8

    key = jax.random.PRNGKey(0)
    key, kx = jax.random.split(key)
    x = jax.random.normal(kx, (batch, sizes[0]), jnp.float32)
    params = init_params(key, sizes)

    out = jax.block_until_ready(my_module_forward(x, params))
    assert out.shape == (batch, sizes[-1])

    # Matched-precision reference (same bf16 weight rounding, f32 accumulation).
    ref_matched = reference_forward(x, params, weights_dtype=jnp.bfloat16)
    assert jnp.allclose(out, ref_matched, atol=1e-4, rtol=1e-4), "mismatch vs matched ref"

    # Pure-f32 reference (PyTorch semantics); looser tol due to bf16 weights.
    ref_f32 = reference_forward(x, params, weights_dtype=jnp.float32)
    assert jnp.allclose(out, ref_f32, atol=5e-2, rtol=5e-2), "mismatch vs f32 ref"

    print("KERNEL_OK")
</pallas_src>

<mosaic_0001>
module attributes {stable_mosaic.version = 11 : i64} {
  func.func @_fused_mlp_l2_kernel(%arg0: i32, %arg1: memref<8x32xf32, #tpu.memory_space<vmem>>, %arg2: memref<32x64xbf16, #tpu.memory_space<vmem>>, %arg3: memref<1x64xf32, #tpu.memory_space<vmem>>, %arg4: memref<64x128xbf16, #tpu.memory_space<vmem>>, %arg5: memref<1x128xf32, #tpu.memory_space<vmem>>, %arg6: memref<8x128xf32, #tpu.memory_space<vmem>>) attributes {dimension_semantics = [#tpu.dimension_semantics<parallel>], iteration_bounds = array<i64: 1>, scalar_prefetch = 0 : i64, scratch_operands = 0 : i64, tpu.core_type = #tpu.core_type<tc>, window_params = [{transform_indices = @transform_0, window_bounds = array<i64: 8, 32>}, {pipeline_mode = #tpu.pipeline_mode<synchronous>, transform_indices = @transform_1, window_bounds = array<i64: 32, 64>}, {pipeline_mode = #tpu.pipeline_mode<synchronous>, transform_indices = @transform_2, window_bounds = array<i64: 1, 64>}, {pipeline_mode = #tpu.pipeline_mode<synchronous>, transform_indices = @transform_3, window_bounds = array<i64: 64, 128>}, {pipeline_mode = #tpu.pipeline_mode<synchronous>, transform_indices = @transform_4, window_bounds = array<i64: 1, 128>}, {transform_indices = @transform_5, window_bounds = array<i64: 8, 128>}]} {
    %c0 = arith.constant 0 : index
    %c0_0 = arith.constant 0 : index
    %0 = vector.load %arg1[%c0, %c0_0] : memref<8x32xf32, #tpu.memory_space<vmem>>, vector<8x32xf32>
    %c0_1 = arith.constant 0 : index
    %c0_2 = arith.constant 0 : index
    %1 = vector.load %arg2[%c0_1, %c0_2] : memref<32x64xbf16, #tpu.memory_space<vmem>>, vector<32x64xbf16>
    %c0_3 = arith.constant 0 : index
    %c0_4 = arith.constant 0 : index
    %2 = vector.load %arg3[%c0_3, %c0_4] : memref<1x64xf32, #tpu.memory_space<vmem>>, vector<1x64xf32>
    %3 = arith.truncf %0 : vector<8x32xf32> to vector<8x32xbf16>
    %cst = arith.constant dense<0.000000e+00> : vector<8x64xf32>
    %4 = tpu.matmul %3, %1, %cst {dimension_numbers = #tpu.dot_dimension_numbers<[1], [0], [0], [1], [0, 0, 1, 1], [], []>} : vector<8x32xbf16>, vector<32x64xbf16>, vector<8x64xf32> -> vector<8x64xf32>
    %5 = vector.broadcast %2 : vector<1x64xf32> to vector<8x64xf32>
    %6 = arith.addf %4, %5 : vector<8x64xf32>
    %cst_5 = arith.constant 0.000000e+00 : f32
    %7 = vector.broadcast %cst_5 : f32 to vector<8x64xf32>
    %8 = arith.maximumf %6, %7 : vector<8x64xf32>
    %c0_6 = arith.constant 0 : index
    %c0_7 = arith.constant 0 : index
    %9 = vector.load %arg4[%c0_6, %c0_7] : memref<64x128xbf16, #tpu.memory_space<vmem>>, vector<64x128xbf16>
    %c0_8 = arith.constant 0 : index
    %c0_9 = arith.constant 0 : index
    %10 = vector.load %arg5[%c0_8, %c0_9] : memref<1x128xf32, #tpu.memory_space<vmem>>, vector<1x128xf32>
    %11 = arith.truncf %8 : vector<8x64xf32> to vector<8x64xbf16>
    %cst_10 = arith.constant dense<0.000000e+00> : vector<8x128xf32>
    %12 = tpu.matmul %11, %9, %cst_10 {dimension_numbers = #tpu.dot_dimension_numbers<[1], [0], [0], [1], [0, 0, 1, 1], [], []>} : vector<8x64xbf16>, vector<64x128xbf16>, vector<8x128xf32> -> vector<8x128xf32>
    %13 = vector.broadcast %10 : vector<1x128xf32> to vector<8x128xf32>
    %14 = arith.addf %12, %13 : vector<8x128xf32>
    %15 = math.tanh %14 : vector<8x128xf32>
    %16 = arith.mulf %15, %15 : vector<8x128xf32>
    %cst_11 = arith.constant dense<0.000000e+00> : vector<8xf32>
    %17 = vector.multi_reduction <add>, %16, %cst_11 [1] : vector<8x128xf32> to vector<8xf32>
    %18 = vector.shape_cast %17 : vector<8xf32> to vector<8x1xf32>
    %19 = math.rsqrt %18 : vector<8x1xf32>
    %20 = vector.broadcast %19 : vector<8x1xf32> to vector<8x128xf32>
    %21 = arith.mulf %15, %20 : vector<8x128xf32>
    %c0_12 = arith.constant 0 : index
    %c0_13 = arith.constant 0 : index
    %22 = vector.load %arg6[%c0_12, %c0_13] : memref<8x128xf32, #tpu.memory_space<vmem>>, vector<8x128xf32>
    tpu.vector_store %arg6[%c0_12, %c0_13], %21 {strides = array<i32>} : memref<8x128xf32, #tpu.memory_space<vmem>>, vector<8x128xf32>,
    return
  }
  func.func @transform_0(%arg0: i32) -> (i32, i32) {
    %c0_i32 = arith.constant 0 : i32
    %c0_i32_0 = arith.constant 0 : i32
    return %arg0, %c0_i32 : i32, i32
  }
  func.func @transform_1(%arg0: i32) -> (i32, i32) {
    %c0_i32 = arith.constant 0 : i32
    %c0_i32_0 = arith.constant 0 : i32
    %c0_i32_1 = arith.constant 0 : i32
    return %c0_i32, %c0_i32_0 : i32, i32
  }
  func.func @transform_2(%arg0: i32) -> (i32, i32) {
    %c0_i32 = arith.constant 0 : i32
    %c0_i32_0 = arith.constant 0 : i32
    %c0_i32_1 = arith.constant 0 : i32
    return %c0_i32, %c0_i32_0 : i32, i32
  }
  func.func @transform_3(%arg0: i32) -> (i32, i32) {
    %c0_i32 = arith.constant 0 : i32
    %c0_i32_0 = arith.constant 0 : i32
    %c0_i32_1 = arith.constant 0 : i32
    return %c0_i32, %c0_i32_0 : i32, i32
  }
  func.func @transform_4(%arg0: i32) -> (i32, i32) {
    %c0_i32 = arith.constant 0 : i32
    %c0_i32_0 = arith.constant 0 : i32
    %c0_i32_1 = arith.constant 0 : i32
    return %c0_i32, %c0_i32_0 : i32, i32
  }
  func.func @transform_5(%arg0: i32) -> (i32, i32) {
    %c0_i32 = arith.constant 0 : i32
    %c0_i32_0 = arith.constant 0 : i32
    return %arg0, %c0_i32 : i32, i32
  }
}

module attributes {stable_mosaic.version = 11 : i64} {
  func.func @_fused_mlp_l2_kernel(%arg0: i32, %arg1: memref<8x32xf32, #tpu.memory_space<vmem>>, %arg2: memref<32x64xbf16, #tpu.memory_space<vmem>>, %arg3: memref<1x64xf32, #tpu.memory_space<vmem>>, %arg4: memref<64x128xbf16, #tpu.memory_space<vmem>>, %arg5: memref<1x128xf32, #tpu.memory_space<vmem>>, %arg6: memref<8x128xf32, #tpu.memory_space<vmem>>) attributes {dimension_semantics = [#tpu.dimension_semantics<parallel>], iteration_bounds = array<i64: 1>, scalar_prefetch = 0 : i64, scratch_operands = 0 : i64, tpu.core_type = #tpu.core_type<tc>, window_params = [{transform_indices = @transform_0, window_bounds = array<i64: 8, 32>}, {pipeline_mode = #tpu.pipeline_mode<synchronous>, transform_indices = @transform_1, window_bounds = array<i64: 32, 64>}, {pipeline_mode = #tpu.pipeline_mode<synchronous>, transform_indices = @transform_2, window_bounds = array<i64: 1, 64>}, {pipeline_mode = #tpu.pipeline_mode<synchronous>, transform_indices = @transform_3, window_bounds = array<i64: 64, 128>}, {pipeline_mode = #tpu.pipeline_mode<synchronous>, transform_indices = @transform_4, window_bounds = array<i64: 1, 128>}, {transform_indices = @transform_5, window_bounds = array<i64: 8, 128>}]} {
    %c0 = arith.constant 0 : index
    %c0_0 = arith.constant 0 : index
    %0 = vector.load %arg1[%c0, %c0_0] : memref<8x32xf32, #tpu.memory_space<vmem>>, vector<8x32xf32>
    %c0_1 = arith.constant 0 : index
    %c0_2 = arith.constant 0 : index
    %1 = vector.load %arg2[%c0_1, %c0_2] : memref<32x64xbf16, #tpu.memory_space<vmem>>, vector<32x64xbf16>
    %c0_3 = arith.constant 0 : index
    %c0_4 = arith.constant 0 : index
    %2 = vector.load %arg3[%c0_3, %c0_4] : memref<1x64xf32, #tpu.memory_space<vmem>>, vector<1x64xf32>
    %3 = arith.truncf %0 : vector<8x32xf32> to vector<8x32xbf16>
    %cst = arith.constant dense<0.000000e+00> : vector<8x64xf32>
    %4 = tpu.matmul %3, %1, %cst {dimension_numbers = #tpu.dot_dimension_numbers<[1], [0], [0], [1], [0, 0, 1, 1], [], []>} : vector<8x32xbf16>, vector<32x64xbf16>, vector<8x64xf32> -> vector<8x64xf32>
    %5 = vector.broadcast %2 : vector<1x64xf32> to vector<8x64xf32>
    %6 = arith.addf %4, %5 : vector<8x64xf32>
    %cst_5 = arith.constant 0.000000e+00 : f32
    %7 = vector.broadcast %cst_5 : f32 to vector<8x64xf32>
    %8 = arith.maximumf %6, %7 : vector<8x64xf32>
    %c0_6 = arith.constant 0 : index
    %c0_7 = arith.constant 0 : index
    %9 = vector.load %arg4[%c0_6, %c0_7] : memref<64x128xbf16, #tpu.memory_space<vmem>>, vector<64x128xbf16>
    %c0_8 = arith.constant 0 : index
    %c0_9 = arith.constant 0 : index
    %10 = vector.load %arg5[%c0_8, %c0_9] : memref<1x128xf32, #tpu.memory_space<vmem>>, vector<1x128xf32>
    %11 = arith.truncf %8 : vector<8x64xf32> to vector<8x64xbf16>
    %cst_10 = arith.constant dense<0.000000e+00> : vector<8x128xf32>
    %12 = tpu.matmul %11, %9, %cst_10 {dimension_numbers = #tpu.dot_dimension_numbers<[1], [0], [0], [1], [0, 0, 1, 1], [], []>} : vector<8x64xbf16>, vector<64x128xbf16>, vector<8x128xf32> -> vector<8x128xf32>
    %13 = vector.broadcast %10 : vector<1x128xf32> to vector<8x128xf32>
    %14 = arith.addf %12, %13 : vector<8x128xf32>
    %15 = math.tanh %14 : vector<8x128xf32>
    %16 = arith.mulf %15, %15 : vector<8x128xf32>
    %cst_11 = arith.constant dense<0.000000e+00> : vector<8xf32>
    %17 = vector.multi_reduction <add>, %16, %cst_11 [1] : vector<8x128xf32> to vector<8xf32>
    %18 = vector.shape_cast %17 : vector<8xf32> to vector<8x1xf32>
    %19 = math.rsqrt %18 : vector<8x1xf32>
    %20 = vector.broadcast %19 : vector<8x1xf32> to vector<8x128xf32>
    %21 = arith.mulf %15, %20 : vector<8x128xf32>
    %c0_12 = arith.constant 0 : index
    %c0_13 = arith.constant 0 : index
    %22 = vector.load %arg6[%c0_12, %c0_13] : memref<8x128xf32, #tpu.memory_space<vmem>>, vector<8x128xf32>
    tpu.vector_store %arg6[%c0_12, %c0_13], %21 {strides = array<i32>} : memref<8x128xf32, #tpu.memory_space<vmem>>, vector<8x128xf32>,
    return
  }
  func.func @transform_0(%arg0: i32) -> (i32, i32) {
    %c0_i32 = arith.constant 0 : i32
    %c0_i32_0 = arith.constant 0 : i32
    return %arg0, %c0_i32 : i32, i32
  }
  func.func @transform_1(%arg0: i32) -> (i32, i32) {
    %c0_i32 = arith.constant 0 : i32
    %c0_i32_0 = arith.constant 0 : i32
    %c0_i32_1 = arith.constant 0 : i32
    return %c0_i32, %c0_i32_0 : i32, i32
  }
  func.func @transform_2(%arg0: i32) -> (i32, i32) {
    %c0_i32 = arith.constant 0 : i32
    %c0_i32_0 = arith.constant 0 : i32
    %c0_i32_1 = arith.constant 0 : i32
    return %c0_i32, %c0_i32_0 : i32, i32
  }
  func.func @transform_3(%arg0: i32) -> (i32, i32) {
    %c0_i32 = arith.constant 0 : i32
    %c0_i32_0 = arith.constant 0 : i32
    %c0_i32_1 = arith.constant 0 : i32
    return %c0_i32, %c0_i32_0 : i32, i32
  }
  func.func @transform_4(%arg0: i32) -> (i32, i32) {
    %c0_i32 = arith.constant 0 : i32
    %c0_i32_0 = arith.constant 0 : i32
    %c0_i32_1 = arith.constant 0 : i32
    return %c0_i32, %c0_i32_0 : i32, i32
  }
  func.func @transform_5(%arg0: i32) -> (i32, i32) {
    %c0_i32 = arith.constant 0 : i32
    %c0_i32_0 = arith.constant 0 : i32
    return %arg0, %c0_i32 : i32, i32
  }
}

</mosaic_0001>

<llo_original>
// kernel: tpu_custom_call.1
$region0: #{tpu_custom_call.1}
  #allocation0 [shape = 'u32[]', space=smem, size = 0x4, offset = 0x4, fixed_abs, tag = 'smem constant byte address 0x4 - core index']
  #allocation1 [shape = 'u32[144,128]{1,0:T(1,128)}', space=vmem, size = 0x12000, scoped, tag = 'internal scratch']
  %s0 = inlined_call_operand.hbm [shape: f32[8,32], index: 0, kind: input, shape index: {}]
  %s1 = inlined_call_operand.hbm [shape: bf16[32,64], index: 1, kind: input, shape index: {}]
  %s2 = inlined_call_operand.vmem [shape: f32[1,64], index: 2, kind: input, shape index: {}]
  %s3 = inlined_call_operand.hbm [shape: bf16[64,128], index: 3, kind: input, shape index: {}]
  %s4 = inlined_call_operand.vmem [shape: f32[1,128], index: 4, kind: input, shape index: {}]
  %s5 = inlined_call_operand.hbm [shape: f32[8,128], index: 5, kind: output, shape index: {}]
  %s6 = sld [smem:[#allocation0]]
  $region42: #{tpu_custom_call.1} parent=0
    _
  %s8 = ssub.s32 1, %s6
  %s9 = scalar_select 0, %s8, %s6
  $region1: #{tpu_custom_call.1} parent=0
    #allocation2 [shape = 'u8[4096]{0}', space=vmem, size = 0x1000, scoped, tag = 'input window, operand 0, single buffered']
    #allocation3 [shape = 's32[1]{0}', space=sflag, size = 0x4, scoped, tag = 'scoped memory for tpu_custom_call.1']
    #allocation4 [shape = 's32[1]{0}', space=sflag, size = 0x4, scoped, tag = 'scoped memory for tpu_custom_call.1']
    #allocation5 [shape = 'u8[8192]{0}', space=vmem, size = 0x2000, scoped, tag = 'input window, operand 1, single buffered']
    #allocation6 [shape = 's32[1]{0}', space=sflag, size = 0x4, scoped, tag = 'scoped memory for tpu_custom_call.1']
    #allocation7 [shape = 'u8[16384]{0}', space=vmem, size = 0x4000, scoped, tag = 'input window, operand 3, single buffered']
    #allocation8 [shape = 'u8[4096]{0}', space=vmem, size = 0x1000, scoped, tag = 'output window, operand 0, single buffered']
    %10 = vsyncpa [#allocation3], 0
    %11 = vsyncpa [#allocation6], 0
    %12 = vsyncpa [#allocation4], 0
    // Predicated region
    $region2: #{tpu_custom_call.1} parent=1 // pred_check
      _
    $region3: #{tpu_custom_call.1} parent=1 // pred_check_branch
      %14 = sbr.rel (0) target = $region5
    $region4: #{tpu_custom_call.1} parent=1 // pred_region
      %s16 = ssub.s32 128, 128
      %17 = vsyncadd [#allocation3], %s16
      %s19 = sshll.u32 [#allocation2], 4
      %s20 = int_to_ptr.vmem [resolvable:$true] %s19
      %22 = dma.hbm_to_vmem [thread:$0]  %s0, 128, %s20, [#allocation3]
    $region5: #{tpu_custom_call.1} parent=1 // pred_fallthru
      _
    // Predicated region
    $region6: #{tpu_custom_call.1} parent=1 // pred_check
      _
    $region7: #{tpu_custom_call.1} parent=1 // pred_check_branch
      %24 = sbr.rel (0) target = $region9
    $region8: #{tpu_custom_call.1} parent=1 // pred_region
      %s26 = ssub.s32 256, 256
      %27 = vsyncadd [#allocation6], %s26
      %s28 = sshll.u32 [#allocation5], 4
      %s29 = int_to_ptr.vmem [resolvable:$true] %s28
      %34 = dma.hbm_to_vmem [thread:$0]  %s1, 256, %s29, [#allocation6], 64, 64, 4
    $region9: #{tpu_custom_call.1} parent=1 // pred_fallthru
      _
    // Predicated region
    $region10: #{tpu_custom_call.1} parent=1 // pred_check
      _
    $region11: #{tpu_custom_call.1} parent=1 // pred_check_branch
      %36 = sbr.rel (0) target = $region13
    $region12: #{tpu_custom_call.1} parent=1 // pred_region
      _
    $region13: #{tpu_custom_call.1} parent=1 // pred_fallthru
      _
    // Predicated region
    $region14: #{tpu_custom_call.1} parent=1 // pred_check
      _
    $region15: #{tpu_custom_call.1} parent=1 // pred_check_branch
      %38 = sbr.rel (0) target = $region17
    $region16: #{tpu_custom_call.1} parent=1 // pred_region
      %s40 = ssub.s32 512, 512
      %41 = vsyncadd [#allocation6], %s40
      %s42 = sshll.u32 [#allocation7], 4
      %s43 = int_to_ptr.vmem [resolvable:$true] %s42
      %48 = dma.hbm_to_vmem [thread:$0]  %s3, 512, %s43, [#allocation6], 64, 64, 4
    $region17: #{tpu_custom_call.1} parent=1 // pred_fallthru
      _
    // Predicated region
    $region18: #{tpu_custom_call.1} parent=1 // pred_check
      _
    $region19: #{tpu_custom_call.1} parent=1 // pred_check_branch
      %50 = sbr.rel (0) target = $region21
    $region20: #{tpu_custom_call.1} parent=1 // pred_region
      _
    $region21: #{tpu_custom_call.1} parent=1 // pred_fallthru
      _
    // Predicated region
    $region22: #{tpu_custom_call.1} parent=1 // pred_check
      _
    $region23: #{tpu_custom_call.1} parent=1 // pred_check_branch
      %52 = sbr.rel (0) target = $region25
    $region24: #{tpu_custom_call.1} parent=1 // pred_region
      %53 = dma.done [#allocation3], 128
    $region25: #{tpu_custom_call.1} parent=1 // pred_fallthru
      _
    // Predicated region
    $region26: #{tpu_custom_call.1} parent=1 // pred_check
      _
    $region27: #{tpu_custom_call.1} parent=1 // pred_check_branch
      %55 = sbr.rel (0) target = $region29
    $region28: #{tpu_custom_call.1} parent=1 // pred_region
      %56 = dma.done [#allocation6], 256
    $region29: #{tpu_custom_call.1} parent=1 // pred_fallthru
      _
    // Predicated region
    $region30: #{tpu_custom_call.1} parent=1 // pred_check
      _
    $region31: #{tpu_custom_call.1} parent=1 // pred_check_branch
      %58 = sbr.rel (0) target = $region33
    $region32: #{tpu_custom_call.1} parent=1 // pred_region
      %59 = dma.done [#allocation6], 512
    $region33: #{tpu_custom_call.1} parent=1 // pred_fallthru
      _
    %v61 = vld [vmem:[#allocation2] sm:$0xff]
    %v62 = vld [vmem:[#allocation5] sm:$0xf]
    %v63 = vld [vmem:[#allocation5 + $0x4] sm:$0xf]
    %v64 = vld [vmem:[#allocation5 + $0x8] sm:$0xf]
    %v65 = vld [vmem:[#allocation5 + $0xc] sm:$0xf]
    %v66 = vld [vmem:[%s2] sm:$0x1]
    %v67 = vpack.c.bf16 %v61, %v61
    %v69 = vlaneseq
    %v70 = vshrl.u32 %v69, 7
    %v71 = vsub.s32 0, %v70
    %v72 = vrot.slane %v66, %v71
    %v78 = vunpack.c.l.b16 %v62
    %v79 = vunpack.c.l.b16 %v63
    %v80 = vunpack.c.l.b16 %v64
    %v81 = vunpack.c.l.b16 %v65
    %v82 = vpack.c.b16 %v79, %v78
    %v83 = vpack.c.b16 %v81, %v80
    %vm86 = vcmask 261120
    %v88 = vsel %vm86, %v67, 0
    %90 = vmatprep.subr.bf16.mxu0 0
    %91 = vmatpush1.bf16.msra.mxu0 %v82
    %92 = vmatprep.subr.bf16.mxu0 0
    %93 = vmatpush1.bf16.msra.mxu0 %v83
    %94 = vmatprep.subr.bf16.mxu0 0
    %95 = vmatpush1.bf16.msra.mxu0 0
    %96 = vmatprep.subr.bf16.mxu0 0
    %97 = vmatpush1.bf16.msra.mxu0 0
    %98 = vmatprep.subr.bf16.mxu0 0
    %99 = vmatpush1.bf16.msra.mxu0 0
    %100 = vmatprep.subr.bf16.mxu0 0
    %101 = vmatpush1.bf16.msra.mxu0 0
    %102 = vmatprep.subr.bf16.mxu0 0
    %103 = vmatpush1.bf16.msra.mxu0 0
    %104 = vmatprep.subr.bf16.mxu0 0
    %105 = vmatpush1.bf16.msra.mxu0 0
    %106 = vmatprep.subr.bf16.mxu0 0
    %107 = vmatpush1.bf16.msra.mxu0 0
    %108 = vmatprep.subr.bf16.mxu0 0
    %109 = vmatpush1.bf16.msra.mxu0 0
    %110 = vmatprep.subr.bf16.mxu0 0
    %111 = vmatpush1.bf16.msra.mxu0 0
    %112 = vmatprep.subr.bf16.mxu0 0
    %113 = vmatpush1.bf16.msra.mxu0 0
    %114 = vmatprep.subr.bf16.mxu0 0
    %115 = vmatpush1.bf16.msra.mxu0 0
    %116 = vmatprep.subr.bf16.mxu0 0
    %117 = vmatpush1.bf16.msra.mxu0 0
    %118 = vmatprep.subr.bf16.mxu0 0
    %119 = vmatpush1.bf16.msra.mxu0 0
    %120 = vmatprep.subr.bf16.mxu0 0
    %121 = vmatpush1.bf16.msra.mxu0 0
    %122 = vmatprep.mubr.bf16.mxu0 0
    %123 = vmatmul.mubr.bf16.gmra.mrb[0].mxu0 %v88
    %v124 = vpop.f32.mrb[0].mxu0
    %v125 = vadd.f32 %v72, %v124
    %v126 = vpop.f32.mrb[0].mxu0
    %v127 = vpop.f32.mrb[0].mxu0
    %v128 = vpop.f32.mrb[0].mxu0
    %129 = vdwg.mxu0
    %v130 = vmax.f32 %v125, 0.0
    %v131 = vld [vmem:[#allocation7] sm:$0xf]
    %v132 = vld [vmem:[#allocation7 + $0x4] sm:$0xf]
    %v133 = vld [vmem:[#allocation7 + $0x8] sm:$0xf]
    %v134 = vld [vmem:[#allocation7 + $0xc] sm:$0xf]
    %v135 = vld [vmem:[#allocation7 + $0x10] sm:$0xf]
    %v136 = vld [vmem:[#allocation7 + $0x14] sm:$0xf]
    %v137 = vld [vmem:[#allocation7 + $0x18] sm:$0xf]
    %v138 = vld [vmem:[#allocation7 + $0x1c] sm:$0xf]
    %v139 = vld [vmem:[%s4] sm:$0x1]
    %v140 = vpack.c.bf16 %v130, %v130
    %v142 = vlaneseq
    %v143 = vshrl.u32 %v142, 7
    %v144 = vsub.s32 0, %v143
    %v145 = vrot.slane %v139, %v144
    %v155 = vunpack.c.l.b16 %v131
    %v156 = vunpack.c.l.b16 %v132
    %v157 = vunpack.c.l.b16 %v133
    %v158 = vunpack.c.l.b16 %v134
    %v159 = vunpack.c.l.b16 %v135
    %v160 = vunpack.c.l.b16 %v136
    %v161 = vunpack.c.l.b16 %v137
    %v162 = vunpack.c.l.b16 %v138
    %v163 = vpack.c.b16 %v156, %v155
    %v164 = vpack.c.b16 %v158, %v157
    %v165 = vpack.c.b16 %v160, %v159
    %v166 = vpack.c.b16 %v162, %v161
    %vm171 = vcmask 523264
    %v173 = vsel %vm171, %v140, 0
    %175 = vmatprep.subr.bf16.mxu0 0
    %176 = vmatpush1.bf16.msra.mxu0 %v163
    %177 = vmatprep.subr.bf16.mxu0 0
    %178 = vmatpush1.bf16.msra.mxu0 %v164
    %179 = vmatprep.subr.bf16.mxu0 0
    %180 = vmatpush1.bf16.msra.mxu0 %v165
    %181 = vmatprep.subr.bf16.mxu0 0
    %182 = vmatpush1.bf16.msra.mxu0 %v166
    %183 = vmatprep.subr.bf16.mxu0 0
    %184 = vmatpush1.bf16.msra.mxu0 0
    %185 = vmatprep.subr.bf16.mxu0 0
    %186 = vmatpush1.bf16.msra.mxu0 0
    %187 = vmatprep.subr.bf16.mxu0 0
    %188 = vmatpush1.bf16.msra.mxu0 0
    %189 = vmatprep.subr.bf16.mxu0 0
    %190 = vmatpush1.bf16.msra.mxu0 0
    %191 = vmatprep.subr.bf16.mxu0 0
    %192 = vmatpush1.bf16.msra.mxu0 0
    %193 = vmatprep.subr.bf16.mxu0 0
    %194 = vmatpush1.bf16.msra.mxu0 0
    %195 = vmatprep.subr.bf16.mxu0 0
    %196 = vmatpush1.bf16.msra.mxu0 0
    %197 = vmatprep.subr.bf16.mxu0 0
    %198 = vmatpush1.bf16.msra.mxu0 0
    %199 = vmatprep.subr.bf16.mxu0 0
    %200 = vmatpush1.bf16.msra.mxu0 0
    %201 = vmatprep.subr.bf16.mxu0 0
    %202 = vmatpush1.bf16.msra.mxu0 0
    %203 = vmatprep.subr.bf16.mxu0 0
    %204 = vmatpush1.bf16.msra.mxu0 0
    %205 = vmatprep.subr.bf16.mxu0 0
    %206 = vmatpush1.bf16.msra.mxu0 0
    %207 = vmatprep.mubr.bf16.mxu0 0
    %208 = vmatmul.mubr.bf16.gmra.mrb[0].mxu0 %v173
    %v209 = vpop.f32.mrb[0].mxu0
    %v210 = vadd.f32 %v145, %v209
    %v211 = vpop.f32.mrb[0].mxu0
    %v212 = vpop.f32.mrb[0].mxu0
    %v213 = vpop.f32.mrb[0].mxu0
    %214 = vdwg.mxu0
    %v215 = vtanh.pop %v210
    %v216 = vmul.f32 %v215, %v215
    %217 = vadd.xlane.f32.xlu0 %v216
    %v218 = vpop.xlane.xlu0 %217
    %v219 = vrsqrt.pop %v218
    %v220 = vmul.f32 %v215, %v219
    %221 = vst [vmem:[#allocation8] sm:$0xff] %v220
    // Predicated region
    $region34: #{tpu_custom_call.1} parent=1 // pred_check
      _
    $region35: #{tpu_custom_call.1} parent=1 // pred_check_branch
      %223 = sbr.rel (0) target = $region37
    $region36: #{tpu_custom_call.1} parent=1 // pred_region
      %s225 = ssub.s32 128, 128
      %226 = vsyncadd [#allocation4], %s225
      %s228 = sshll.u32 [#allocation8], 4
      %s229 = int_to_ptr.vmem [resolvable:$true] %s228
      %231 = dma.vmem_to_hbm [thread:$0]  %s229, 128, %s5, [#allocation4]
    $region37: #{tpu_custom_call.1} parent=1 // pred_fallthru
      _
    // Predicated region
    $region38: #{tpu_custom_call.1} parent=1 // pred_check
      _
    $region39: #{tpu_custom_call.1} parent=1 // pred_check_branch
      %233 = sbr.rel (0) target = $region41
    $region40: #{tpu_custom_call.1} parent=1 // pred_region
      %234 = dma.done [#allocation4], 128
    $region41: #{tpu_custom_call.1} parent=1 // pred_fallthru
      _
    %235 = vsyncpa [#allocation3], 1
    %236 = vsyncpa [#allocation6], 1
    %237 = vsyncpa [#allocation4], 1

// kernel: tpu_custom_call.1
$region0: #{tpu_custom_call.1}
  #allocation0 [shape = 'u32[]', space=smem, size = 0x4, offset = 0x4, fixed_abs, tag = 'smem constant byte address 0x4 - core index']
  #allocation1 [shape = 'u32[144,128]{1,0:T(1,128)}', space=vmem, size = 0x12000, scoped, tag = 'internal scratch']
  %s0 = inlined_call_operand.hbm [shape: f32[8,32], index: 0, kind: input, shape index: {}]
  %s1 = inlined_call_operand.hbm [shape: bf16[32,64], index: 1, kind: input, shape index: {}]
  %s2 = inlined_call_operand.vmem [shape: f32[1,64], index: 2, kind: input, shape index: {}]
  %s3 = inlined_call_operand.hbm [shape: bf16[64,128], index: 3, kind: input, shape index: {}]
  %s4 = inlined_call_operand.vmem [shape: f32[1,128], index: 4, kind: input, shape index: {}]
  %s5 = inlined_call_operand.hbm [shape: f32[8,128], index: 5, kind: output, shape index: {}]
  %s6 = sld [smem:[#allocation0]]
  $region42: #{tpu_custom_call.1} parent=0
    _
  %s8 = ssub.s32 1, %s6
  %s9 = scalar_select 0, %s8, %s6
  $region1: #{tpu_custom_call.1} parent=0
    #allocation2 [shape = 'u8[4096]{0}', space=vmem, size = 0x1000, scoped, tag = 'input window, operand 0, single buffered']
    #allocation3 [shape = 's32[1]{0}', space=sflag, size = 0x4, scoped, tag = 'scoped memory for tpu_custom_call.1']
    #allocation4 [shape = 's32[1]{0}', space=sflag, size = 0x4, scoped, tag = 'scoped memory for tpu_custom_call.1']
    #allocation5 [shape = 'u8[8192]{0}', space=vmem, size = 0x2000, scoped, tag = 'input window, operand 1, single buffered']
    #allocation6 [shape = 's32[1]{0}', space=sflag, size = 0x4, scoped, tag = 'scoped memory for tpu_custom_call.1']
    #allocation7 [shape = 'u8[16384]{0}', space=vmem, size = 0x4000, scoped, tag = 'input window, operand 3, single buffered']
    #allocation8 [shape = 'u8[4096]{0}', space=vmem, size = 0x1000, scoped, tag = 'output window, operand 0, single buffered']
    %10 = vsyncpa [#allocation3], 0
    %11 = vsyncpa [#allocation6], 0
    %12 = vsyncpa [#allocation4], 0
    // Predicated region
    $region2: #{tpu_custom_call.1} parent=1 // pred_check
      _
    $region3: #{tpu_custom_call.1} parent=1 // pred_check_branch
      %14 = sbr.rel (0) target = $region5
    $region4: #{tpu_custom_call.1} parent=1 // pred_region
      %s16 = ssub.s32 128, 128
      %17 = vsyncadd [#allocation3], %s16
      %s19 = sshll.u32 [#allocation2], 4
      %s20 = int_to_ptr.vmem [resolvable:$true] %s19
      %22 = dma.hbm_to_vmem [thread:$0]  %s0, 128, %s20, [#allocation3]
    $region5: #{tpu_custom_call.1} parent=1 // pred_fallthru
      _
    // Predicated region
    $region6: #{tpu_custom_call.1} parent=1 // pred_check
      _
    $region7: #{tpu_custom_call.1} parent=1 // pred_check_branch
      %24 = sbr.rel (0) target = $region9
    $region8: #{tpu_custom_call.1} parent=1 // pred_region
      %s26 = ssub.s32 256, 256
      %27 = vsyncadd [#allocation6], %s26
      %s28 = sshll.u32 [#allocation5], 4
      %s29 = int_to_ptr.vmem [resolvable:$true] %s28
      %34 = dma.hbm_to_vmem [thread:$0]  %s1, 256, %s29, [#allocation6], 64, 64, 4
    $region9: #{tpu_custom_call.1} parent=1 // pred_fallthru
      _
    // Predicated region
    $region10: #{tpu_custom_call.1} parent=1 // pred_check
      _
    $region11: #{tpu_custom_call.1} parent=1 // pred_check_branch
      %36 = sbr.rel (0) target = $region13
    $region12: #{tpu_custom_call.1} parent=1 // pred_region
      _
    $region13: #{tpu_custom_call.1} parent=1 // pred_fallthru
      _
    // Predicated region
    $region14: #{tpu_custom_call.1} parent=1 // pred_check
      _
    $region15: #{tpu_custom_call.1} parent=1 // pred_check_branch
      %38 = sbr.rel (0) target = $region17
    $region16: #{tpu_custom_call.1} parent=1 // pred_region
      %s40 = ssub.s32 512, 512
      %41 = vsyncadd [#allocation6], %s40
      %s42 = sshll.u32 [#allocation7], 4
      %s43 = int_to_ptr.vmem [resolvable:$true] %s42
      %48 = dma.hbm_to_vmem [thread:$0]  %s3, 512, %s43, [#allocation6], 64, 64, 4
    $region17: #{tpu_custom_call.1} parent=1 // pred_fallthru
      _
    // Predicated region
    $region18: #{tpu_custom_call.1} parent=1 // pred_check
      _
    $region19: #{tpu_custom_call.1} parent=1 // pred_check_branch
      %50 = sbr.rel (0) target = $region21
    $region20: #{tpu_custom_call.1} parent=1 // pred_region
      _
    $region21: #{tpu_custom_call.1} parent=1 // pred_fallthru
      _
    // Predicated region
    $region22: #{tpu_custom_call.1} parent=1 // pred_check
      _
    $region23: #{tpu_custom_call.1} parent=1 // pred_check_branch
      %52 = sbr.rel (0) target = $region25
    $region24: #{tpu_custom_call.1} parent=1 // pred_region
      %53 = dma.done [#allocation3], 128
    $region25: #{tpu_custom_call.1} parent=1 // pred_fallthru
      _
    // Predicated region
    $region26: #{tpu_custom_call.1} parent=1 // pred_check
      _
    $region27: #{tpu_custom_call.1} parent=1 // pred_check_branch
      %55 = sbr.rel (0) target = $region29
    $region28: #{tpu_custom_call.1} parent=1 // pred_region
      %56 = dma.done [#allocation6], 256
    $region29: #{tpu_custom_call.1} parent=1 // pred_fallthru
      _
    // Predicated region
    $region30: #{tpu_custom_call.1} parent=1 // pred_check
      _
    $region31: #{tpu_custom_call.1} parent=1 // pred_check_branch
      %58 = sbr.rel (0) target = $region33
    $region32: #{tpu_custom_call.1} parent=1 // pred_region
      %59 = dma.done [#allocation6], 512
    $region33: #{tpu_custom_call.1} parent=1 // pred_fallthru
      _
    %v61 = vld [vmem:[#allocation2] sm:$0xff]
    %v62 = vld [vmem:[#allocation5] sm:$0xf]
    %v63 = vld [vmem:[#allocation5 + $0x4] sm:$0xf]
    %v64 = vld [vmem:[#allocation5 + $0x8] sm:$0xf]
    %v65 = vld [vmem:[#allocation5 + $0xc] sm:$0xf]
    %v66 = vld [vmem:[%s2] sm:$0x1]
    %v67 = vpack.c.bf16 %v61, %v61
    %v69 = vlaneseq
    %v70 = vshrl.u32 %v69, 7
    %v71 = vsub.s32 0, %v70
    %v72 = vrot.slane %v66, %v71
    %v78 = vunpack.c.l.b16 %v62
    %v79 = vunpack.c.l.b16 %v63
    %v80 = vunpack.c.l.b16 %v64
    %v81 = vunpack.c.l.b16 %v65
    %v82 = vpack.c.b16 %v79, %v78
    %v83 = vpack.c.b16 %v81, %v80
    %vm86 = vcmask 261120
    %v88 = vsel %vm86, %v67, 0
    %90 = vmatprep.subr.bf16.mxu0 0
    %91 = vmatpush1.bf16.msra.mxu0 %v82
    %92 = vmatprep.subr.bf16.mxu0 0
    %93 = vmatpush1.bf16.msra.mxu0 %v83
    %94 = vmatprep.subr.bf16.mxu0 0
    %95 = vmatpush1.bf16.msra.mxu0 0
    %96 = vmatprep.subr.bf16.mxu0 0
    %97 = vmatpush1.bf16.msra.mxu0 0
    %98 = vmatprep.subr.bf16.mxu0 0
    %99 = vmatpush1.bf16.msra.mxu0 0
    %100 = vmatprep.subr.bf16.mxu0 0
    %101 = vmatpush1.bf16.msra.mxu0 0
    %102 = vmatprep.subr.bf16.mxu0 0
    %103 = vmatpush1.bf16.msra.mxu0 0
    %104 = vmatprep.subr.bf16.mxu0 0
    %105 = vmatpush1.bf16.msra.mxu0 0
    %106 = vmatprep.subr.bf16.mxu0 0
    %107 = vmatpush1.bf16.msra.mxu0 0
    %108 = vmatprep.subr.bf16.mxu0 0
    %109 = vmatpush1.bf16.msra.mxu0 0
    %110 = vmatprep.subr.bf16.mxu0 0
    %111 = vmatpush1.bf16.msra.mxu0 0
    %112 = vmatprep.subr.bf16.mxu0 0
    %113 = vmatpush1.bf16.msra.mxu0 0
    %114 = vmatprep.subr.bf16.mxu0 0
    %115 = vmatpush1.bf16.msra.mxu0 0
    %116 = vmatprep.subr.bf16.mxu0 0
    %117 = vmatpush1.bf16.msra.mxu0 0
    %118 = vmatprep.subr.bf16.mxu0 0
    %119 = vmatpush1.bf16.msra.mxu0 0
    %120 = vmatprep.subr.bf16.mxu0 0
    %121 = vmatpush1.bf16.msra.mxu0 0
    %122 = vmatprep.mubr.bf16.mxu0 0
    %123 = vmatmul.mubr.bf16.gmra.mrb[0].mxu0 %v88
    %v124 = vpop.f32.mrb[0].mxu0
    %v125 = vadd.f32 %v72, %v124
    %v126 = vpop.f32.mrb[0].mxu0
    %v127 = vpop.f32.mrb[0].mxu0
    %v128 = vpop.f32.mrb[0].mxu0
    %129 = vdwg.mxu0
    %v130 = vmax.f32 %v125, 0.0
    %v131 = vld [vmem:[#allocation7] sm:$0xf]
    %v132 = vld [vmem:[#allocation7 + $0x4] sm:$0xf]
    %v133 = vld [vmem:[#allocation7 + $0x8] sm:$0xf]
    %v134 = vld [vmem:[#allocation7 + $0xc] sm:$0xf]
    %v135 = vld [vmem:[#allocation7 + $0x10] sm:$0xf]
    %v136 = vld [vmem:[#allocation7 + $0x14] sm:$0xf]
    %v137 = vld [vmem:[#allocation7 + $0x18] sm:$0xf]
    %v138 = vld [vmem:[#allocation7 + $0x1c] sm:$0xf]
    %v139 = vld [vmem:[%s4] sm:$0x1]
    %v140 = vpack.c.bf16 %v130, %v130
    %v142 = vlaneseq
    %v143 = vshrl.u32 %v142, 7
    %v144 = vsub.s32 0, %v143
    %v145 = vrot.slane %v139, %v144
    %v155 = vunpack.c.l.b16 %v131
    %v156 = vunpack.c.l.b16 %v132
    %v157 = vunpack.c.l.b16 %v133
    %v158 = vunpack.c.l.b16 %v134
    %v159 = vunpack.c.l.b16 %v135
    %v160 = vunpack.c.l.b16 %v136
    %v161 = vunpack.c.l.b16 %v137
    %v162 = vunpack.c.l.b16 %v138
    %v163 = vpack.c.b16 %v156, %v155
    %v164 = vpack.c.b16 %v158, %v157
    %v165 = vpack.c.b16 %v160, %v159
    %v166 = vpack.c.b16 %v162, %v161
    %vm171 = vcmask 523264
    %v173 = vsel %vm171, %v140, 0
    %175 = vmatprep.subr.bf16.mxu0 0
    %176 = vmatpush1.bf16.msra.mxu0 %v163
    %177 = vmatprep.subr.bf16.mxu0 0
    %178 = vmatpush1.bf16.msra.mxu0 %v164
    %179 = vmatprep.subr.bf16.mxu0 0
    %180 = vmatpush1.bf16.msra.mxu0 %v165
    %181 = vmatprep.subr.bf16.mxu0 0
    %182 = vmatpush1.bf16.msra.mxu0 %v166
    %183 = vmatprep.subr.bf16.mxu0 0
    %184 = vmatpush1.bf16.msra.mxu0 0
    %185 = vmatprep.subr.bf16.mxu0 0
    %186 = vmatpush1.bf16.msra.mxu0 0
    %187 = vmatprep.subr.bf16.mxu0 0
    %188 = vmatpush1.bf16.msra.mxu0 0
    %189 = vmatprep.subr.bf16.mxu0 0
    %190 = vmatpush1.bf16.msra.mxu0 0
    %191 = vmatprep.subr.bf16.mxu0 0
    %192 = vmatpush1.bf16.msra.mxu0 0
    %193 = vmatprep.subr.bf16.mxu0 0
    %194 = vmatpush1.bf16.msra.mxu0 0
    %195 = vmatprep.subr.bf16.mxu0 0
    %196 = vmatpush1.bf16.msra.mxu0 0
    %197 = vmatprep.subr.bf16.mxu0 0
    %198 = vmatpush1.bf16.msra.mxu0 0
    %199 = vmatprep.subr.bf16.mxu0 0
    %200 = vmatpush1.bf16.msra.mxu0 0
    %201 = vmatprep.subr.bf16.mxu0 0
    %202 = vmatpush1.bf16.msra.mxu0 0
    %203 = vmatprep.subr.bf16.mxu0 0
    %204 = vmatpush1.bf16.msra.mxu0 0
    %205 = vmatprep.subr.bf16.mxu0 0
    %206 = vmatpush1.bf16.msra.mxu0 0
    %207 = vmatprep.mubr.bf16.mxu0 0
    %208 = vmatmul.mubr.bf16.gmra.mrb[0].mxu0 %v173
    %v209 = vpop.f32.mrb[0].mxu0
    %v210 = vadd.f32 %v145, %v209
    %v211 = vpop.f32.mrb[0].mxu0
    %v212 = vpop.f32.mrb[0].mxu0
    %v213 = vpop.f32.mrb[0].mxu0
    %214 = vdwg.mxu0
    %v215 = vtanh.pop %v210
    %v216 = vmul.f32 %v215, %v215
    %217 = vadd.xlane.f32.xlu0 %v216
    %v218 = vpop.xlane.xlu0 %217
    %v219 = vrsqrt.pop %v218
    %v220 = vmul.f32 %v215, %v219
    %221 = vst [vmem:[#allocation8] sm:$0xff] %v220
    // Predicated region
    $region34: #{tpu_custom_call.1} parent=1 // pred_check
      _
    $region35: #{tpu_custom_call.1} parent=1 // pred_check_branch
      %223 = sbr.rel (0) target = $region37
    $region36: #{tpu_custom_call.1} parent=1 // pred_region
      %s225 = ssub.s32 128, 128
      %226 = vsyncadd [#allocation4], %s225
      %s228 = sshll.u32 [#allocation8], 4
      %s229 = int_to_ptr.vmem [resolvable:$true] %s228
      %231 = dma.vmem_to_hbm [thread:$0]  %s229, 128, %s5, [#allocation4]
    $region37: #{tpu_custom_call.1} parent=1 // pred_fallthru
      _
    // Predicated region
    $region38: #{tpu_custom_call.1} parent=1 // pred_check
      _
    $region39: #{tpu_custom_call.1} parent=1 // pred_check_branch
      %233 = sbr.rel (0) target = $region41
    $region40: #{tpu_custom_call.1} parent=1 // pred_region
      %234 = dma.done [#allocation4], 128
    $region41: #{tpu_custom_call.1} parent=1 // pred_fallthru
      _
    %235 = vsyncpa [#allocation3], 1
    %236 = vsyncpa [#allocation6], 1
    %237 = vsyncpa [#allocation4], 1

</llo_original>
